<compile_context>
chip_gen: v5e
topology: v5e:2x2
jax: 0.10.0
libtpu: 0.0.40
codegen_flags: <defaults>
</compile_context>

<pallas_src>
import jax
import jax.numpy as jnp
from jax.experimental import pallas as pl
from jax.experimental.pallas import tpu as pltpu


def _se_kernel(x_ref, w1_ref, w2_ref, o_ref):
    # x_ref / o_ref: (Bt, C, HW)   w1_ref: (C, C_r)   w2_ref: (C_r, C)
    x = x_ref[...]                                            # native dtype

    # Squeeze: global average pool over spatial positions (lane-axis reduce),
    # accumulating in f32 without materializing a full f32 copy of the slab.
    inv_hw = jnp.float32(1.0 / x.shape[2])
    pooled = jnp.sum(x, axis=2, dtype=jnp.float32) * inv_hw   # (Bt, C) f32

    # Excitation: Linear(C -> C_r, no bias) -> ReLU -> Linear(C_r -> C) -> Sigmoid.
    # Matmul operands stay in the weights' native dtype; accumulate in f32.
    w1 = w1_ref[...]
    w2 = w2_ref[...]
    h = jnp.dot(pooled.astype(w1.dtype), w1,
                preferred_element_type=jnp.float32)           # (Bt, C_r)
    h = jnp.maximum(h, 0.0)
    y = jnp.dot(h.astype(w2.dtype), w2,
                preferred_element_type=jnp.float32)           # (Bt, C)
    y = jax.nn.sigmoid(y)

    # Scale: broadcast the per-(b, c) gate along the HW lane axis; multiply in
    # x's native dtype (no full-slab f32 temp).
    o_ref[...] = (x * y.astype(x.dtype)[:, :, None]).astype(o_ref.dtype)


def _vmem_limit_bytes():
    """Generation-aware scoped-VMEM limit (below physical, with headroom)."""
    try:
        cap = int(pltpu.get_tpu_info().vmem_capacity_bytes)
    except Exception:
        cap = 64 << 20                      # conservative: v7x per-TC VMEM
    if cap >= (96 << 20):                   # v5e / v6e: 128 MiB physical
        return 64 << 20
    return 48 << 20                         # v7x: 64 MiB per TensorCore


def _choose_bt(B, per_image_bytes, budget_bytes, prefer_steps=4,
               min_slab_bytes=2 << 20):
    """Largest Bt whose (Bt, C, HW) slab fits the per-buffer budget; if the
    grid would then have < prefer_steps steps, shrink Bt toward prefer_steps
    — but never below a ~2 MiB slab, so v5e/v6e keep long DMAs while v7x's
    two TensorCores get enough parallel steps."""
    bt = int(max(1, min(B, budget_bytes // per_image_bytes)))
    steps = pl.cdiv(B, bt)
    if steps < prefer_steps:
        for target in range(prefer_steps, steps, -1):
            bt_t = int(pl.cdiv(B, target))
            if (bt_t * per_image_bytes >= min_slab_bytes
                    and pl.cdiv(B, bt_t) > steps):
                return bt_t
    return bt


def se_layer(x, w1, w2):
    """SE forward. x: (B, C, H, W). w1 = W_fc1.T (C, C//r). w2 = W_fc2.T (C//r, C)."""
    B, C, H, W = x.shape
    HW = H * W
    C_r = w1.shape[1]
    itemsize = jnp.dtype(x.dtype).itemsize

    # Free reshape (collapses contiguous trailing dims) — no transpose passes.
    x3 = x.reshape(B, C, HW)

    vmem_limit = _vmem_limit_bytes()
    # Slab footprint multiplier ~6x: 2x double-buffered input, 2x double-
    # buffered output, plus in-kernel live values.
    per_image = max(1, C * HW * itemsize)
    budget = max(per_image, vmem_limit // 6)
    # TODO(synk): if a single image's (C, HW) slab exceeds the budget,
    # restructure into a two-pass kernel (pool-accumulate over an HW grid
    # axis, then a scale pass) instead of the whole-image-resident block.
    Bt = _choose_bt(B, per_image, budget)
    grid = (pl.cdiv(B, Bt),)

    w_bytes = (w1.size * jnp.dtype(w1.dtype).itemsize
               + w2.size * jnp.dtype(w2.dtype).itemsize)
    cost = pl.CostEstimate(
        flops=(B * C * HW                 # pool adds
               + 2 * B * C * C_r * 2      # two tiny FC matmuls
               + B * C * HW),             # channel-wise rescale multiplies
        transcendentals=B * C,            # sigmoid
        bytes_accessed=2 * B * C * HW * itemsize + w_bytes,
    )

    out3 = pl.pallas_call(
        _se_kernel,
        out_shape=jax.ShapeDtypeStruct((B, C, HW), x.dtype),
        grid_spec=pltpu.PrefetchScalarGridSpec(
            num_scalar_prefetch=0,
            grid=grid,
            in_specs=[
                pl.BlockSpec((Bt, C, HW), lambda b: (b, 0, 0)),   # x slab
                pl.BlockSpec((C, C_r), lambda b: (0, 0)),         # resident w1
                pl.BlockSpec((C_r, C), lambda b: (0, 0)),         # resident w2
            ],
            out_specs=pl.BlockSpec((Bt, C, HW), lambda b: (b, 0, 0)),
        ),
        compiler_params=pltpu.CompilerParams(
            dimension_semantics=("parallel",),
            vmem_limit_bytes=vmem_limit,
        ),
        cost_estimate=cost,
    )(x3, w1, w2)

    return out3.reshape(B, C, H, W)


def _reference(x, w1, w2):
    # Pure-JAX reference matching the PyTorch forward.
    pooled = jnp.mean(x, axis=(2, 3))                 # (B, C)
    h = jnp.maximum(pooled @ w1, 0.0)                 # (B, C_r)
    y = jax.nn.sigmoid(h @ w2)                        # (B, C)
    return x * y[:, :, None, None]


if __name__ == "__main__":
    key = jax.random.PRNGKey(0)
    B, C, H, W = 2, 64, 16, 16          # HW = 256 -> lane-dense stores
    reduction = 16
    C_r = C // reduction

    kx, k1, k2 = jax.random.split(key, 3)
    x = jax.random.normal(kx, (B, C, H, W), dtype=jnp.float32)
    # PyTorch nn.Linear(channel, channel//r, bias=False) stores weight (C_r, C);
    # we hold the transposed matmul operands directly: w1 = W_fc1.T, w2 = W_fc2.T.
    w1 = jax.random.normal(k1, (C, C_r), dtype=jnp.float32) * 0.1
    w2 = jax.random.normal(k2, (C_r, C), dtype=jnp.float32) * 0.1

    out = se_layer(x, w1, w2)
    jax.block_until_ready(out)

    ref = _reference(x, w1, w2)
    assert out.shape == (B, C, H, W)
    assert jnp.allclose(out, ref, atol=1e-5, rtol=1e-5), "mismatch vs reference"

    print("KERNEL_OK")
</pallas_src>

<mosaic_0001>
module attributes {stable_mosaic.version = 11 : i64} {
  func.func @_se_kernel(%arg0: i32, %arg1: memref<2x64x256xf32, #tpu.memory_space<vmem>>, %arg2: memref<64x4xf32, #tpu.memory_space<vmem>>, %arg3: memref<4x64xf32, #tpu.memory_space<vmem>>, %arg4: memref<2x64x256xf32, #tpu.memory_space<vmem>>) attributes {dimension_semantics = [#tpu.dimension_semantics<parallel>], iteration_bounds = array<i64: 1>, scalar_prefetch = 0 : i64, scratch_operands = 0 : i64, tpu.core_type = #tpu.core_type<tc>, window_params = [{transform_indices = @transform_0, window_bounds = array<i64: 2, 64, 256>}, {pipeline_mode = #tpu.pipeline_mode<synchronous>, transform_indices = @transform_1, window_bounds = array<i64: 64, 4>}, {pipeline_mode = #tpu.pipeline_mode<synchronous>, transform_indices = @transform_2, window_bounds = array<i64: 4, 64>}, {transform_indices = @transform_3, window_bounds = array<i64: 2, 64, 256>}]} {
    %c0 = arith.constant 0 : index
    %c0_0 = arith.constant 0 : index
    %c0_1 = arith.constant 0 : index
    %0 = vector.load %arg1[%c0, %c0_0, %c0_1] : memref<2x64x256xf32, #tpu.memory_space<vmem>>, vector<2x64x256xf32>
    %cst = arith.constant dense<0.000000e+00> : vector<2x64xf32>
    %1 = vector.multi_reduction <add>, %0, %cst [2] : vector<2x64x256xf32> to vector<2x64xf32>
    %cst_2 = arith.constant 3.906250e-03 : f32
    %2 = vector.broadcast %cst_2 : f32 to vector<2x64xf32>
    %3 = arith.mulf %1, %2 : vector<2x64xf32>
    %c0_3 = arith.constant 0 : index
    %c0_4 = arith.constant 0 : index
    %4 = vector.load %arg2[%c0_3, %c0_4] : memref<64x4xf32, #tpu.memory_space<vmem>>, vector<64x4xf32>
    %c0_5 = arith.constant 0 : index
    %c0_6 = arith.constant 0 : index
    %5 = vector.load %arg3[%c0_5, %c0_6] : memref<4x64xf32, #tpu.memory_space<vmem>>, vector<4x64xf32>
    %cst_7 = arith.constant dense<0.000000e+00> : vector<2x4xf32>
    %6 = tpu.matmul %3, %4, %cst_7 {dimension_numbers = #tpu.dot_dimension_numbers<[1], [0], [0], [1], [0, 0, 1, 1], [], []>} : vector<2x64xf32>, vector<64x4xf32>, vector<2x4xf32> -> vector<2x4xf32>
    %cst_8 = arith.constant 0.000000e+00 : f32
    %7 = vector.broadcast %cst_8 : f32 to vector<2x4xf32>
    %8 = arith.maximumf %6, %7 : vector<2x4xf32>
    %cst_9 = arith.constant dense<0.000000e+00> : vector<2x64xf32>
    %9 = tpu.matmul %8, %5, %cst_9 {dimension_numbers = #tpu.dot_dimension_numbers<[1], [0], [0], [1], [0, 0, 1, 1], [], []>} : vector<2x4xf32>, vector<4x64xf32>, vector<2x64xf32> -> vector<2x64xf32>
    %10 = arith.negf %9 : vector<2x64xf32>
    %11 = math.exp %10 : vector<2x64xf32>
    %cst_10 = arith.constant 1.000000e+00 : f32
    %12 = vector.broadcast %cst_10 : f32 to vector<2x64xf32>
    %13 = arith.addf %12, %11 : vector<2x64xf32>
    %14 = arith.divf %12, %13 : vector<2x64xf32>
    %15 = vector.shape_cast %14 : vector<2x64xf32> to vector<2x64x1xf32>
    %16 = vector.broadcast %15 : vector<2x64x1xf32> to vector<2x64x256xf32>
    %17 = arith.mulf %0, %16 : vector<2x64x256xf32>
    %c0_11 = arith.constant 0 : index
    %c0_12 = arith.constant 0 : index
    %c0_13 = arith.constant 0 : index
    %18 = vector.load %arg4[%c0_11, %c0_12, %c0_13] : memref<2x64x256xf32, #tpu.memory_space<vmem>>, vector<2x64x256xf32>
    tpu.vector_store %arg4[%c0_11, %c0_12, %c0_13], %17 {strides = array<i32>} : memref<2x64x256xf32, #tpu.memory_space<vmem>>, vector<2x64x256xf32>,
    return
  }
  func.func @transform_0(%arg0: i32) -> (i32, i32, i32) {
    %c0_i32 = arith.constant 0 : i32
    %c0_i32_0 = arith.constant 0 : i32
    %c0_i32_1 = arith.constant 0 : i32
    return %arg0, %c0_i32, %c0_i32_0 : i32, i32, i32
  }
  func.func @transform_1(%arg0: i32) -> (i32, i32) {
    %c0_i32 = arith.constant 0 : i32
    %c0_i32_0 = arith.constant 0 : i32
    %c0_i32_1 = arith.constant 0 : i32
    return %c0_i32, %c0_i32_0 : i32, i32
  }
  func.func @transform_2(%arg0: i32) -> (i32, i32) {
    %c0_i32 = arith.constant 0 : i32
    %c0_i32_0 = arith.constant 0 : i32
    %c0_i32_1 = arith.constant 0 : i32
    return %c0_i32, %c0_i32_0 : i32, i32
  }
  func.func @transform_3(%arg0: i32) -> (i32, i32, i32) {
    %c0_i32 = arith.constant 0 : i32
    %c0_i32_0 = arith.constant 0 : i32
    %c0_i32_1 = arith.constant 0 : i32
    return %arg0, %c0_i32, %c0_i32_0 : i32, i32, i32
  }
}

</mosaic_0001>

<llo_original>
// kernel: tpu_custom_call.1
$region0: #{tpu_custom_call.1}
  #allocation0 [shape = 'u32[]', space=smem, size = 0x4, offset = 0x4, fixed_abs, tag = 'smem constant byte address 0x4 - core index']
  #allocation1 [shape = 'u32[72,128]{1,0:T(1,128)}', space=vmem, size = 0x9000, scoped, tag = 'internal scratch']
  %s0 = inlined_call_operand.hbm [shape: f32[2,64,256], index: 0, kind: input, shape index: {}]
  %s1 = inlined_call_operand.vmem [shape: f32[64,4], index: 1, kind: input, shape index: {}]
  %s2 = inlined_call_operand.vmem [shape: f32[4,64], index: 2, kind: input, shape index: {}]
  %s3 = inlined_call_operand.hbm [shape: f32[2,64,256], index: 3, kind: output, shape index: {}]
  %s4 = sld [smem:[#allocation0]]
  $region26: #{tpu_custom_call.1} parent=0
    _
  %s6 = ssub.s32 1, %s4
  %s7 = scalar_select 0, %s6, %s4
  $region1: #{tpu_custom_call.1} parent=0
    #allocation2 [shape = 'u8[131072]{0}', space=vmem, size = 0x20000, scoped, tag = 'input window, operand 0, single buffered']
    #allocation3 [shape = 's32[1]{0}', space=sflag, size = 0x4, scoped, tag = 'scoped memory for tpu_custom_call.1']
    #allocation4 [shape = 's32[1]{0}', space=sflag, size = 0x4, scoped, tag = 'scoped memory for tpu_custom_call.1']
    #allocation5 [shape = 'u8[131072]{0}', space=vmem, size = 0x20000, scoped, tag = 'output window, operand 0, single buffered']
    %8 = vsyncpa [#allocation3], 0
    %9 = vsyncpa [#allocation4], 0
    // Predicated region
    $region2: #{tpu_custom_call.1} parent=1 // pred_check
      _
    $region3: #{tpu_custom_call.1} parent=1 // pred_check_branch
      %11 = sbr.rel (0) target = $region5
    $region4: #{tpu_custom_call.1} parent=1 // pred_region
      %13 = vsyncadd [#allocation3], 0
      %s14 = sshll.u32 %s0, 4
      %s15 = int_to_ptr.hbm [resolvable:$true] %s14
      %s16 = sshll.u32 [#allocation2], 4
      %s17 = int_to_ptr.vmem [resolvable:$true] %s16
      %22 = dma.hbm_to_vmem [thread:$0]  %s15, 4096, %s17, [#allocation3], 256, 256, 16
    $region5: #{tpu_custom_call.1} parent=1 // pred_fallthru
      _
    // Predicated region
    $region6: #{tpu_custom_call.1} parent=1 // pred_check
      _
    $region7: #{tpu_custom_call.1} parent=1 // pred_check_branch
      %24 = sbr.rel (0) target = $region9
    $region8: #{tpu_custom_call.1} parent=1 // pred_region
      _
    $region9: #{tpu_custom_call.1} parent=1 // pred_fallthru
      _
    // Predicated region
    $region10: #{tpu_custom_call.1} parent=1 // pred_check
      _
    $region11: #{tpu_custom_call.1} parent=1 // pred_check_branch
      %26 = sbr.rel (0) target = $region13
    $region12: #{tpu_custom_call.1} parent=1 // pred_region
      _
    $region13: #{tpu_custom_call.1} parent=1 // pred_fallthru
      _
    // Predicated region
    $region14: #{tpu_custom_call.1} parent=1 // pred_check
      _
    $region15: #{tpu_custom_call.1} parent=1 // pred_check_branch
      %28 = sbr.rel (0) target = $region17
    $region16: #{tpu_custom_call.1} parent=1 // pred_region
      %30 = dma.done [#allocation3], 4096
    $region17: #{tpu_custom_call.1} parent=1 // pred_fallthru
      _
    %v31 = vld [vmem:[#allocation2] sm:$0xff]
    %v32 = vld [vmem:[#allocation2 + $0x8] sm:$0xff]
    %v33 = vld [vmem:[#allocation2 + $0x10] sm:$0xff]
    %v34 = vld [vmem:[#allocation2 + $0x18] sm:$0xff]
    %v35 = vld [vmem:[#allocation2 + $0x20] sm:$0xff]
    %v36 = vld [vmem:[#allocation2 + $0x28] sm:$0xff]
    %v37 = vld [vmem:[#allocation2 + $0x30] sm:$0xff]
    %v38 = vld [vmem:[#allocation2 + $0x38] sm:$0xff]
    %v39 = vld [vmem:[#allocation2 + $0x40] sm:$0xff]
    %v40 = vld [vmem:[#allocation2 + $0x48] sm:$0xff]
    %v41 = vld [vmem:[#allocation2 + $0x50] sm:$0xff]
    %v42 = vld [vmem:[#allocation2 + $0x58] sm:$0xff]
    %v43 = vld [vmem:[#allocation2 + $0x60] sm:$0xff]
    %v44 = vld [vmem:[#allocation2 + $0x68] sm:$0xff]
    %v45 = vld [vmem:[#allocation2 + $0x70] sm:$0xff]
    %v46 = vld [vmem:[#allocation2 + $0x78] sm:$0xff]
    %v47 = vld [vmem:[#allocation2 + $0x80] sm:$0xff]
    %v48 = vld [vmem:[#allocation2 + $0x88] sm:$0xff]
    %v49 = vld [vmem:[#allocation2 + $0x90] sm:$0xff]
    %v50 = vld [vmem:[#allocation2 + $0x98] sm:$0xff]
    %v51 = vld [vmem:[#allocation2 + $0xa0] sm:$0xff]
    %v52 = vld [vmem:[#allocation2 + $0xa8] sm:$0xff]
    %v53 = vld [vmem:[#allocation2 + $0xb0] sm:$0xff]
    %v54 = vld [vmem:[#allocation2 + $0xb8] sm:$0xff]
    %v55 = vld [vmem:[#allocation2 + $0xc0] sm:$0xff]
    %v56 = vld [vmem:[#allocation2 + $0xc8] sm:$0xff]
    %v57 = vld [vmem:[#allocation2 + $0xd0] sm:$0xff]
    %v58 = vld [vmem:[#allocation2 + $0xd8] sm:$0xff]
    %v59 = vld [vmem:[#allocation2 + $0xe0] sm:$0xff]
    %v60 = vld [vmem:[#allocation2 + $0xe8] sm:$0xff]
    %v61 = vld [vmem:[#allocation2 + $0xf0] sm:$0xff]
    %v62 = vld [vmem:[#allocation2 + $0xf8] sm:$0xff]
    %v63 = vadd.f32 %v31, %v32
    %64 = vadd.xlane.f32.xlu0 %v63
    %v65 = vpop.xlane.xlu0 %64
    %v66 = vadd.f32 %v33, %v34
    %67 = vadd.xlane.f32.xlu0 %v66
    %v68 = vpop.xlane.xlu0 %67
    %v69 = vadd.f32 %v35, %v36
    %70 = vadd.xlane.f32.xlu0 %v69
    %v71 = vpop.xlane.xlu0 %70
    %v72 = vadd.f32 %v37, %v38
    %73 = vadd.xlane.f32.xlu0 %v72
    %v74 = vpop.xlane.xlu0 %73
    %v75 = vadd.f32 %v39, %v40
    %76 = vadd.xlane.f32.xlu0 %v75
    %v77 = vpop.xlane.xlu0 %76
    %v78 = vadd.f32 %v41, %v42
    %79 = vadd.xlane.f32.xlu0 %v78
    %v80 = vpop.xlane.xlu0 %79
    %v81 = vadd.f32 %v43, %v44
    %82 = vadd.xlane.f32.xlu0 %v81
    %v83 = vpop.xlane.xlu0 %82
    %v84 = vadd.f32 %v45, %v46
    %85 = vadd.xlane.f32.xlu0 %v84
    %v86 = vpop.xlane.xlu0 %85
    %v87 = vadd.f32 %v47, %v48
    %88 = vadd.xlane.f32.xlu0 %v87
    %v89 = vpop.xlane.xlu0 %88
    %v90 = vadd.f32 %v49, %v50
    %91 = vadd.xlane.f32.xlu0 %v90
    %v92 = vpop.xlane.xlu0 %91
    %v93 = vadd.f32 %v51, %v52
    %94 = vadd.xlane.f32.xlu0 %v93
    %v95 = vpop.xlane.xlu0 %94
    %v96 = vadd.f32 %v53, %v54
    %97 = vadd.xlane.f32.xlu0 %v96
    %v98 = vpop.xlane.xlu0 %97
    %v99 = vadd.f32 %v55, %v56
    %100 = vadd.xlane.f32.xlu0 %v99
    %v101 = vpop.xlane.xlu0 %100
    %v102 = vadd.f32 %v57, %v58
    %103 = vadd.xlane.f32.xlu0 %v102
    %v104 = vpop.xlane.xlu0 %103
    %v105 = vadd.f32 %v59, %v60
    %106 = vadd.xlane.f32.xlu0 %v105
    %v107 = vpop.xlane.xlu0 %106
    %v108 = vadd.f32 %v61, %v62
    %109 = vadd.xlane.f32.xlu0 %v108
    %v110 = vpop.xlane.xlu0 %109
    %v111 = vmul.f32 %v65, 0.00390625
    %v112 = vmul.f32 %v68, 0.00390625
    %v113 = vmul.f32 %v71, 0.00390625
    %v114 = vmul.f32 %v74, 0.00390625
    %v115 = vmul.f32 %v77, 0.00390625
    %v116 = vmul.f32 %v80, 0.00390625
    %v117 = vmul.f32 %v83, 0.00390625
    %v118 = vmul.f32 %v86, 0.00390625
    %v119 = vmul.f32 %v89, 0.00390625
    %v120 = vmul.f32 %v92, 0.00390625
    %v121 = vmul.f32 %v95, 0.00390625
    %v122 = vmul.f32 %v98, 0.00390625
    %v123 = vmul.f32 %v101, 0.00390625
    %v124 = vmul.f32 %v104, 0.00390625
    %v125 = vmul.f32 %v107, 0.00390625
    %v126 = vmul.f32 %v110, 0.00390625
    %v127 = vld [vmem:[%s1] sm:$0xff]
    %v128 = vld [vmem:[%s1 + $0x8] sm:$0xff]
    %v129 = vld [vmem:[%s1 + $0x10] sm:$0xff]
    %v130 = vld [vmem:[%s1 + $0x18] sm:$0xff]
    %v131 = vld [vmem:[%s1 + $0x20] sm:$0xff]
    %v132 = vld [vmem:[%s1 + $0x28] sm:$0xff]
    %v133 = vld [vmem:[%s1 + $0x30] sm:$0xff]
    %v134 = vld [vmem:[%s1 + $0x38] sm:$0xff]
    %v135 = vld [vmem:[%s2] sm:$0xf]
    %v152 = vlaneseq
    %v153 = vand.u32 %v152, 127
    %v154 = vperm.slane %v111, %v153
    %v155 = vadd.s32 %v153, 4294967288
    %v156 = vperm.slane %v112, %v155
    %vm157 = vcmask 130112
    %v158 = vsel %vm157, %v156, %v154
    %v159 = vadd.s32 %v153, 4294967280
    %v160 = vperm.slane %v113, %v159
    %vm161 = vcmask 195712
    %v162 = vsel %vm161, %v160, %v158
    %v163 = vadd.s32 %v153, 4294967272
    %v164 = vperm.slane %v114, %v163
    %vm165 = vcmask 261312
    %v166 = vsel %vm165, %v164, %v162
    %v167 = vadd.s32 %v153, 4294967264
    %v168 = vperm.slane %v115, %v167
    %vm169 = vcmask 326912
    %v170 = vsel %vm169, %v168, %v166
    %v171 = vadd.s32 %v153, 4294967256
    %v172 = vperm.slane %v116, %v171
    %vm173 = vcmask 392512
    %v174 = vsel %vm173, %v172, %v170
    %v175 = vadd.s32 %v153, 4294967248
    %v176 = vperm.slane %v117, %v175
    %vm177 = vcmask 458112
    %v178 = vsel %vm177, %v176, %v174
    %v179 = vadd.s32 %v153, 4294967240
    %v180 = vperm.slane %v118, %v179
    %vm181 = vcmask 523712
    %v182 = vsel %vm181, %v180, %v178
    %v183 = vperm.slane %v119, %v153
    %v184 = vperm.slane %v120, %v155
    %v185 = vsel %vm157, %v184, %v183
    %v186 = vperm.slane %v121, %v159
    %v187 = vsel %vm161, %v186, %v185
    %v188 = vperm.slane %v122, %v163
    %v189 = vsel %vm165, %v188, %v187
    %v190 = vperm.slane %v123, %v167
    %v191 = vsel %vm169, %v190, %v189
    %v192 = vperm.slane %v124, %v171
    %v193 = vsel %vm173, %v192, %v191
    %v194 = vperm.slane %v125, %v175
    %v195 = vsel %vm177, %v194, %v193
    %v196 = vperm.slane %v126, %v179
    %v197 = vsel %vm181, %v196, %v195
    %vm198 = vcmask 1041409
    %v199 = vsel %vm198, %v197, %v182
    %vm200 = vcmask 523264
    %v201 = vsel %vm200, %v199, 0
    %203 = vmatpush.msra.mxu0 0.0
    %204 = vmatpush.msra.mxu0 0.0
    %205 = vmatpush.msra.mxu0 0.0
    %206 = vmatpush.msra.mxu0 0.0
    %207 = vmatpush.msra.mxu0 0.0
    %208 = vmatpush.msra.mxu0 0.0
    %209 = vmatpush.msra.mxu0 0.0
    %210 = vmatpush.msra.mxu0 0.0
    %211 = vmatpush.msra.mxu0 %v134
    %212 = vmatpush.msra.mxu0 %v133
    %213 = vmatpush.msra.mxu0 %v132
    %214 = vmatpush.msra.mxu0 %v131
    %215 = vmatpush.msra.mxu0 %v130
    %216 = vmatpush.msra.mxu0 %v129
    %217 = vmatpush.msra.mxu0 %v128
    %218 = vmatpush.msra.mxu0 %v127
    %219 = vmatmul.f32.gmra.mxu0 %v201
    %v220 = vpop.f32.mrf.mxu0
    %v221 = vadd.f32 0.0, %v220
    %222 = vdwg.mxu0
    %v223 = vmax.f32 %v221, 0.0
    %vm224 = vcmask 31744
    %v226 = vsel %vm224, %v223, 0
    %vm228 = vcmask 1043456
    %v230 = vsel %vm228, %v135, 0
    %232 = vmatpush.msra.mxu0 0.0
    %233 = vmatpush.msra.mxu0 0.0
    %234 = vmatpush.msra.mxu0 0.0
    %235 = vmatpush.msra.mxu0 0.0
    %236 = vmatpush.msra.mxu0 0.0
    %237 = vmatpush.msra.mxu0 0.0
    %238 = vmatpush.msra.mxu0 0.0
    %239 = vmatpush.msra.mxu0 0.0
    %240 = vmatpush.msra.mxu0 0.0
    %241 = vmatpush.msra.mxu0 0.0
    %242 = vmatpush.msra.mxu0 0.0
    %243 = vmatpush.msra.mxu0 0.0
    %244 = vmatpush.msra.mxu0 0.0
    %245 = vmatpush.msra.mxu0 0.0
    %246 = vmatpush.msra.mxu0 0.0
    %247 = vmatpush.msra.mxu0 %v230
    %248 = vmatmul.f32.gmra.mxu0 %v226
    %v249 = vpop.f32.mrf.mxu0
    %v250 = vadd.f32 0.0, %v249
    %251 = vdwg.mxu0
    %v252 = vxor.u32 %v250, 2147483648
    %v253 = vmul.f32 %v252, 1.442695
    %v254 = vpow.pop %v253
    %v255 = vadd.f32 %v254, 1.0
    %v256 = vrcp.pop %v255
    %v257 = vmul.f32 %v255, %v256
    %v258 = vsub.f32 1.0, %v257
    %v259 = vmul.f32 %v256, %v258
    %v260 = vadd.f32 %v256, %v259
    %vm261 = vweird.f32 %v255
    %vm262 = vweird.f32 %v256
    %vm263 = vmor %vm261, %vm262
    %v264 = vsel %vm263, %v256, %v260
    %v265 = vand.u32 2147483647, %v255
    %vm266 = vcmp.eq.f32.partialorder %v265, 8.507059e+37
    %v267 = vand.u32 %v255, 2147483648
    %v268 = vor.u32 1.1754944e-38, %v267
    %v269 = vsel %vm266, %v268, %v264
    %v270 = vmul.f32 1.0, %v269
    %v271 = vperm.slane %v270, 0
    %v272 = vlaneseq
    %v273 = vshrl.u32 %v272, 7
    %275 = vset.pattern.permute.xlu0 %v273
    %276 = vperm.xlu0 %275, %v271
    %v277 = vpop.permute.xlu0 %276
    %v278 = vlaneseq
    %v279 = vshrl.u32 %v278, 7
    %v280 = vadd.s32 %v279, 8
    %281 = vset.pattern.permute.xlu0 %v280
    %282 = vperm.xlu0 %281, %v271
    %v283 = vpop.permute.xlu0 %282
    %v284 = vlaneseq
    %v285 = vshrl.u32 %v284, 7
    %v286 = vadd.s32 %v285, 16
    %287 = vset.pattern.permute.xlu0 %v286
    %288 = vperm.xlu0 %287, %v271
    %v289 = vpop.permute.xlu0 %288
    %v290 = vlaneseq
    %v291 = vshrl.u32 %v290, 7
    %v292 = vadd.s32 %v291, 24
    %293 = vset.pattern.permute.xlu0 %v292
    %294 = vperm.xlu0 %293, %v271
    %v295 = vpop.permute.xlu0 %294
    %v296 = vlaneseq
    %v297 = vshrl.u32 %v296, 7
    %v298 = vadd.s32 %v297, 32
    %299 = vset.pattern.permute.xlu0 %v298
    %300 = vperm.xlu0 %299, %v271
    %v301 = vpop.permute.xlu0 %300
    %v302 = vlaneseq
    %v303 = vshrl.u32 %v302, 7
    %v304 = vadd.s32 %v303, 40
    %305 = vset.pattern.permute.xlu0 %v304
    %306 = vperm.xlu0 %305, %v271
    %v307 = vpop.permute.xlu0 %306
    %v308 = vlaneseq
    %v309 = vshrl.u32 %v308, 7
    %v310 = vadd.s32 %v309, 48
    %311 = vset.pattern.permute.xlu0 %v310
    %312 = vperm.xlu0 %311, %v271
    %v313 = vpop.permute.xlu0 %312
    %v314 = vlaneseq
    %v315 = vshrl.u32 %v314, 7
    %v316 = vadd.s32 %v315, 56
    %317 = vset.pattern.permute.xlu0 %v316
    %318 = vperm.xlu0 %317, %v271
    %v319 = vpop.permute.xlu0 %318
    %v320 = vperm.slane %v270, 1
    %v321 = vlaneseq
    %v322 = vshrl.u32 %v321, 7
    %324 = vset.pattern.permute.xlu0 %v322
    %325 = vperm.xlu0 %324, %v320
    %v326 = vpop.permute.xlu0 %325
    %v327 = vlaneseq
    %v328 = vshrl.u32 %v327, 7
    %v329 = vadd.s32 %v328, 8
    %330 = vset.pattern.permute.xlu0 %v329
    %331 = vperm.xlu0 %330, %v320
    %v332 = vpop.permute.xlu0 %331
    %v333 = vlaneseq
    %v334 = vshrl.u32 %v333, 7
    %v335 = vadd.s32 %v334, 16
    %336 = vset.pattern.permute.xlu0 %v335
    %337 = vperm.xlu0 %336, %v320
    %v338 = vpop.permute.xlu0 %337
    %v339 = vlaneseq
    %v340 = vshrl.u32 %v339, 7
    %v341 = vadd.s32 %v340, 24
    %342 = vset.pattern.permute.xlu0 %v341
    %343 = vperm.xlu0 %342, %v320
    %v344 = vpop.permute.xlu0 %343
    %v345 = vlaneseq
    %v346 = vshrl.u32 %v345, 7
    %v347 = vadd.s32 %v346, 32
    %348 = vset.pattern.permute.xlu0 %v347
    %349 = vperm.xlu0 %348, %v320
    %v350 = vpop.permute.xlu0 %349
    %v351 = vlaneseq
    %v352 = vshrl.u32 %v351, 7
    %v353 = vadd.s32 %v352, 40
    %354 = vset.pattern.permute.xlu0 %v353
    %355 = vperm.xlu0 %354, %v320
    %v356 = vpop.permute.xlu0 %355
    %v357 = vlaneseq
    %v358 = vshrl.u32 %v357, 7
    %v359 = vadd.s32 %v358, 48
    %360 = vset.pattern.permute.xlu0 %v359
    %361 = vperm.xlu0 %360, %v320
    %v362 = vpop.permute.xlu0 %361
    %v363 = vlaneseq
    %v364 = vshrl.u32 %v363, 7
    %v365 = vadd.s32 %v364, 56
    %366 = vset.pattern.permute.xlu0 %v365
    %367 = vperm.xlu0 %366, %v320
    %v368 = vpop.permute.xlu0 %367
    %v369 = vmul.f32 %v31, %v277
    %v370 = vmul.f32 %v32, %v277
    %v371 = vmul.f32 %v33, %v283
    %v372 = vmul.f32 %v34, %v283
    %v373 = vmul.f32 %v35, %v289
    %v374 = vmul.f32 %v36, %v289
    %v375 = vmul.f32 %v37, %v295
    %v376 = vmul.f32 %v38, %v295
    %v377 = vmul.f32 %v39, %v301
    %v378 = vmul.f32 %v40, %v301
    %v379 = vmul.f32 %v41, %v307
    %v380 = vmul.f32 %v42, %v307
    %v381 = vmul.f32 %v43, %v313
    %v382 = vmul.f32 %v44, %v313
    %v383 = vmul.f32 %v45, %v319
    %v384 = vmul.f32 %v46, %v319
    %v385 = vmul.f32 %v47, %v326
    %v386 = vmul.f32 %v48, %v326
    %v387 = vmul.f32 %v49, %v332
    %v388 = vmul.f32 %v50, %v332
    %v389 = vmul.f32 %v51, %v338
    %v390 = vmul.f32 %v52, %v338
    %v391 = vmul.f32 %v53, %v344
    %v392 = vmul.f32 %v54, %v344
    %v393 = vmul.f32 %v55, %v350
    %v394 = vmul.f32 %v56, %v350
    %v395 = vmul.f32 %v57, %v356
    %v396 = vmul.f32 %v58, %v356
    %v397 = vmul.f32 %v59, %v362
    %v398 = vmul.f32 %v60, %v362
    %v399 = vmul.f32 %v61, %v368
    %v400 = vmul.f32 %v62, %v368
    %401 = vst [vmem:[#allocation5] sm:$0xff] %v369
    %402 = vst [vmem:[#allocation5 + $0x8] sm:$0xff] %v370
    %403 = vst [vmem:[#allocation5 + $0x10] sm:$0xff] %v371
    %404 = vst [vmem:[#allocation5 + $0x18] sm:$0xff] %v372
    %405 = vst [vmem:[#allocation5 + $0x20] sm:$0xff] %v373
    %406 = vst [vmem:[#allocation5 + $0x28] sm:$0xff] %v374
    %407 = vst [vmem:[#allocation5 + $0x30] sm:$0xff] %v375
    %408 = vst [vmem:[#allocation5 + $0x38] sm:$0xff] %v376
    %409 = vst [vmem:[#allocation5 + $0x40] sm:$0xff] %v377
    %410 = vst [vmem:[#allocation5 + $0x48] sm:$0xff] %v378
    %411 = vst [vmem:[#allocation5 + $0x50] sm:$0xff] %v379
    %412 = vst [vmem:[#allocation5 + $0x58] sm:$0xff] %v380
    %413 = vst [vmem:[#allocation5 + $0x60] sm:$0xff] %v381
    %414 = vst [vmem:[#allocation5 + $0x68] sm:$0xff] %v382
    %415 = vst [vmem:[#allocation5 + $0x70] sm:$0xff] %v383
    %416 = vst [vmem:[#allocation5 + $0x78] sm:$0xff] %v384
    %417 = vst [vmem:[#allocation5 + $0x80] sm:$0xff] %v385
    %418 = vst [vmem:[#allocation5 + $0x88] sm:$0xff] %v386
    %419 = vst [vmem:[#allocation5 + $0x90] sm:$0xff] %v387
    %420 = vst [vmem:[#allocation5 + $0x98] sm:$0xff] %v388
    %421 = vst [vmem:[#allocation5 + $0xa0] sm:$0xff] %v389
    %422 = vst [vmem:[#allocation5 + $0xa8] sm:$0xff] %v390
    %423 = vst [vmem:[#allocation5 + $0xb0] sm:$0xff] %v391
    %424 = vst [vmem:[#allocation5 + $0xb8] sm:$0xff] %v392
    %425 = vst [vmem:[#allocation5 + $0xc0] sm:$0xff] %v393
    %426 = vst [vmem:[#allocation5 + $0xc8] sm:$0xff] %v394
    %427 = vst [vmem:[#allocation5 + $0xd0] sm:$0xff] %v395
    %428 = vst [vmem:[#allocation5 + $0xd8] sm:$0xff] %v396
    %429 = vst [vmem:[#allocation5 + $0xe0] sm:$0xff] %v397
    %430 = vst [vmem:[#allocation5 + $0xe8] sm:$0xff] %v398
    %431 = vst [vmem:[#allocation5 + $0xf0] sm:$0xff] %v399
    %432 = vst [vmem:[#allocation5 + $0xf8] sm:$0xff] %v400
    // Predicated region
    $region18: #{tpu_custom_call.1} parent=1 // pred_check
      _
    $region19: #{tpu_custom_call.1} parent=1 // pred_check_branch
      %434 = sbr.rel (0) target = $region21
    $region20: #{tpu_custom_call.1} parent=1 // pred_region
      %436 = vsyncadd [#allocation4], 0
      %s437 = sshll.u32 [#allocation5], 4
      %s438 = int_to_ptr.vmem [resolvable:$true] %s437
      %s439 = sshll.u32 %s3, 4
      %s440 = int_to_ptr.hbm [resolvable:$true] %s439
      %445 = dma.vmem_to_hbm [thread:$0]  %s438, 4096, %s440, [#allocation4], 256, 256, 16
    $region21: #{tpu_custom_call.1} parent=1 // pred_fallthru
      _
    // Predicated region
    $region22: #{tpu_custom_call.1} parent=1 // pred_check
      _
    $region23: #{tpu_custom_call.1} parent=1 // pred_check_branch
      %447 = sbr.rel (0) target = $region25
    $region24: #{tpu_custom_call.1} parent=1 // pred_region
      %449 = dma.done [#allocation4], 4096
    $region25: #{tpu_custom_call.1} parent=1 // pred_fallthru
      _
    %450 = vsyncpa [#allocation3], 1
    %451 = vsyncpa [#allocation4], 1

</llo_original>
